<compile_context>
chip_gen: v6e
topology: v6e:2x2x1
jax: 0.10.0
libtpu: 0.0.40
codegen_flags: <defaults>
</compile_context>

<pallas_src>
import jax
import jax.numpy as jnp
from jax.experimental import pallas as pl
from jax.experimental.pallas import tpu as pltpu


def _residual_conv1x1_kernel(w_ref, b_ref, x_ref, o_ref):
    """Fused 1x1 conv + residual for one (batch, spatial-tile) block.

    w_ref: VMEM (C, C) resident  [c_out, c_in], activation dtype
    b_ref: VMEM (C, 1) resident, f32
    x_ref/o_ref: VMEM (1, C, TS)  -- TS on the lane axis
    """
    x = x_ref[0]                                                     # (C, TS)
    fx = jnp.dot(w_ref[...], x, preferred_element_type=jnp.float32)  # MXU
    o_ref[0] = (fx + b_ref[...] + x.astype(jnp.float32)).astype(o_ref.dtype)


def _vmem_capacity_bytes():
    try:
        return int(pltpu.get_tpu_info().vmem_capacity_bytes)
    except Exception:
        return 64 << 20  # conservative (v7x per-TC VMEM)


def _pick_spatial_tile(S, C, x_itemsize, vmem_budget_bytes, tile_cap,
                       n_batch, min_grid_steps):
    """Largest lane-dense (multiple-of-128) spatial tile within the VMEM budget,
    shrunk until the grid has enough steps for megacore / pipelining."""
    if S <= 128:
        return S  # block dim == full array dim is always legal
    # Live VMEM per lane of spatial tile:
    #   double-buffered x tile + double-buffered out tile  = 4 * C * itemsize
    #   f32 intermediates inside the kernel (fx + upcast x) = 2 * C * 4
    per_lane = 4 * C * x_itemsize + 2 * C * 4
    weight_bytes = 2 * (C * C * x_itemsize + C * 4)  # resident w + b (slack x2)
    max_ts = (vmem_budget_bytes - weight_bytes) // per_lane
    max_ts = max(128, (max_ts // 128) * 128)
    padded_s = ((S + 127) // 128) * 128
    ts = min(max_ts, tile_cap, padded_s)
    ts = max(128, (ts // 128) * 128)
    # Guarantee enough grid steps so both v7x TCs get work and the DMA
    # pipeline can double-buffer.
    while n_batch * pl.cdiv(S, ts) < min_grid_steps and ts > 128:
        ts = max(128, ((ts // 2) // 128) * 128)
    return ts


def residual_conv1x1(x_nchw, w, b, *, vmem_budget_bytes=None,
                     spatial_tile_cap=32768, min_grid_steps=4):
    """out = Conv2d(C, C, 1)(x) + x, fused in one Pallas kernel (NCHW in/out).

    x_nchw: (N, C, H, W)
    w:      (C_out, C_in) == (C, C)  (PyTorch conv weight, squeezed)
    b:      (C,)

    Note: for best load/store bandwidth C should be a multiple of 8 (f32) /
    16 (bf16); smaller C (as in the demo) works but wastes sublane bandwidth.
    """
    N, C, H, W = x_nchw.shape
    S = H * W
    x3 = x_nchw.reshape(N, C, S)  # free reshape (NCHW-contiguous)

    phys_vmem = _vmem_capacity_bytes()
    if vmem_budget_bytes is None:
        # ~48 MiB on v5e/v6e (128 MiB physical), ~32 MiB on v7x (64 MiB per TC).
        vmem_budget_bytes = min(48 << 20, phys_vmem // 2)
    vmem_limit = min(phys_vmem, vmem_budget_bytes + (8 << 20))

    itemsize = jnp.dtype(x_nchw.dtype).itemsize
    TS = _pick_spatial_tile(S, C, itemsize, vmem_budget_bytes,
                            spatial_tile_cap, N, min_grid_steps)
    grid = (N, pl.cdiv(S, TS))  # partial last block handled by Pallas

    # Weight in activation dtype (native MXU passes, no f32 emulation for bf16
    # activations); bias kept f32 since it is added after the f32 accumulate.
    w_arg = w.astype(x_nchw.dtype)
    b_arg = b.reshape(C, 1).astype(jnp.float32)

    w_spec = pl.BlockSpec((C, C), lambda n, s: (0, 0))  # resident in VMEM
    b_spec = pl.BlockSpec((C, 1), lambda n, s: (0, 0))
    x_spec = pl.BlockSpec((1, C, TS), lambda n, s: (n, 0, s))
    o_spec = pl.BlockSpec((1, C, TS), lambda n, s: (n, 0, s))

    out3 = pl.pallas_call(
        _residual_conv1x1_kernel,
        out_shape=jax.ShapeDtypeStruct((N, C, S), x_nchw.dtype),
        grid_spec=pltpu.PrefetchScalarGridSpec(
            num_scalar_prefetch=0,
            grid=grid,
            in_specs=[w_spec, b_spec, x_spec],
            out_specs=o_spec,
        ),
        compiler_params=pltpu.CompilerParams(
            dimension_semantics=("parallel", "parallel"),
            vmem_limit_bytes=vmem_limit),
    )(w_arg, b_arg, x3)

    return out3.reshape(N, C, H, W)


if __name__ == "__main__":
    key = jax.random.PRNGKey(0)
    kx, kw, kb = jax.random.split(key, 3)

    N, C, H, W = 2, 4, 16, 16
    x = jax.random.normal(kx, (N, C, H, W), dtype=jnp.float32)
    # Deterministic synthetic parameters for fn = Conv2d(C, C, 1) (PyTorch layout)
    w = jax.random.normal(kw, (C, C), dtype=jnp.float32) * 0.1   # (C_out, C_in)
    b = jax.random.normal(kb, (C,), dtype=jnp.float32) * 0.1

    out = residual_conv1x1(x, w, b)
    out = jax.block_until_ready(out)

    # Pure-JAX reference: fn(x) + x with fn = 1x1 conv (PyTorch NCHW semantics)
    ref = jnp.einsum("oc,nchw->nohw", w, x) + b[None, :, None, None] + x

    assert out.shape == x.shape and out.dtype == x.dtype
    assert jnp.allclose(out, ref, atol=1e-5, rtol=1e-5)
    print("KERNEL_OK")
</pallas_src>

<mosaic_0001>
module attributes {stable_mosaic.version = 11 : i64} {
  func.func @_residual_conv1x1_kernel(%arg0: i32, %arg1: i32, %arg2: memref<4x4xf32, #tpu.memory_space<vmem>>, %arg3: memref<4x1xf32, #tpu.memory_space<vmem>>, %arg4: memref<1x4x128xf32, #tpu.memory_space<vmem>>, %arg5: memref<1x4x128xf32, #tpu.memory_space<vmem>>) attributes {dimension_semantics = [#tpu.dimension_semantics<parallel>, #tpu.dimension_semantics<parallel>], iteration_bounds = array<i64: 2, 2>, scalar_prefetch = 0 : i64, scratch_operands = 0 : i64, tpu.core_type = #tpu.core_type<tc>, window_params = [{pipeline_mode = #tpu.pipeline_mode<synchronous>, transform_indices = @transform_0, window_bounds = array<i64: 4, 4>}, {pipeline_mode = #tpu.pipeline_mode<synchronous>, transform_indices = @transform_1, window_bounds = array<i64: 4, 1>}, {transform_indices = @transform_2, window_bounds = array<i64: 1, 4, 128>}, {transform_indices = @transform_3, window_bounds = array<i64: 1, 4, 128>}]} {
    %c0 = arith.constant 0 : index
    %c0_0 = arith.constant 0 : index
    %c0_1 = arith.constant 0 : index
    %0 = vector.load %arg4[%c0, %c0_0, %c0_1] : memref<1x4x128xf32, #tpu.memory_space<vmem>>, vector<1x4x128xf32>
    %1 = vector.shape_cast %0 : vector<1x4x128xf32> to vector<4x128xf32>
    %c0_2 = arith.constant 0 : index
    %c0_3 = arith.constant 0 : index
    %2 = vector.load %arg2[%c0_2, %c0_3] : memref<4x4xf32, #tpu.memory_space<vmem>>, vector<4x4xf32>
    %cst = arith.constant dense<0.000000e+00> : vector<4x128xf32>
    %3 = tpu.matmul %2, %1, %cst {dimension_numbers = #tpu.dot_dimension_numbers<[1], [0], [0], [1], [0, 0, 1, 1], [], []>} : vector<4x4xf32>, vector<4x128xf32>, vector<4x128xf32> -> vector<4x128xf32>
    %c0_4 = arith.constant 0 : index
    %c0_5 = arith.constant 0 : index
    %4 = vector.load %arg3[%c0_4, %c0_5] : memref<4x1xf32, #tpu.memory_space<vmem>>, vector<4x1xf32>
    %5 = vector.broadcast %4 : vector<4x1xf32> to vector<4x128xf32>
    %6 = arith.addf %3, %5 : vector<4x128xf32>
    %7 = arith.addf %6, %1 : vector<4x128xf32>
    %c0_6 = arith.constant 0 : index
    %c0_7 = arith.constant 0 : index
    %c0_8 = arith.constant 0 : index
    %8 = vector.load %arg5[%c0_6, %c0_7, %c0_8] : memref<1x4x128xf32, #tpu.memory_space<vmem>>, vector<1x4x128xf32>
    %9 = vector.shape_cast %8 : vector<1x4x128xf32> to vector<4x128xf32>
    %10 = vector.shape_cast %7 : vector<4x128xf32> to vector<1x4x128xf32>
    tpu.vector_store %arg5[%c0_6, %c0_7, %c0_8], %10 {strides = array<i32>} : memref<1x4x128xf32, #tpu.memory_space<vmem>>, vector<1x4x128xf32>,
    return
  }
  func.func @transform_0(%arg0: i32, %arg1: i32) -> (i32, i32) {
    %c0_i32 = arith.constant 0 : i32
    %c0_i32_0 = arith.constant 0 : i32
    %c0_i32_1 = arith.constant 0 : i32
    return %c0_i32, %c0_i32_0 : i32, i32
  }
  func.func @transform_1(%arg0: i32, %arg1: i32) -> (i32, i32) {
    %c0_i32 = arith.constant 0 : i32
    %c0_i32_0 = arith.constant 0 : i32
    %c0_i32_1 = arith.constant 0 : i32
    return %c0_i32, %c0_i32_0 : i32, i32
  }
  func.func @transform_2(%arg0: i32, %arg1: i32) -> (i32, i32, i32) {
    %c0_i32 = arith.constant 0 : i32
    %c0_i32_0 = arith.constant 0 : i32
    return %arg0, %c0_i32, %arg1 : i32, i32, i32
  }
  func.func @transform_3(%arg0: i32, %arg1: i32) -> (i32, i32, i32) {
    %c0_i32 = arith.constant 0 : i32
    %c0_i32_0 = arith.constant 0 : i32
    return %arg0, %c0_i32, %arg1 : i32, i32, i32
  }
}

</mosaic_0001>

<llo_original>
// kernel: tpu_custom_call.1
$region0: #{tpu_custom_call.1}
  #allocation0 [shape = 'u32[]', space=smem, size = 0x4, offset = 0x4, fixed_abs, tag = 'smem constant byte address 0x4 - core index']
  #allocation1 [shape = 'u32[144,128]{1,0:T(1,128)}', space=vmem, size = 0x12000, scoped, tag = 'internal scratch']
  %s0 = inlined_call_operand.vmem [shape: f32[4,4], index: 0, kind: input, shape index: {}]
  %s1 = inlined_call_operand.vmem [shape: f32[4,1], index: 1, kind: input, shape index: {}]
  %s2 = inlined_call_operand.hbm [shape: f32[2,4,256], index: 2, kind: input, shape index: {}]
  %s3 = inlined_call_operand.hbm [shape: f32[2,4,256], index: 3, kind: output, shape index: {}]
  %s4 = sld [smem:[#allocation0]]
  $region49: #{tpu_custom_call.1} parent=0
    _
  %s6 = ssub.s32 1, %s4
  %s7 = scalar_select 0, %s6, %s4
  $region1: #{tpu_custom_call.1} parent=0
    #allocation2 [shape = 'u8[4096]{0}', space=vmem, size = 0x1000, scoped, tag = 'input window, operand 2']
    #allocation3 [shape = 's32[2]{0}', space=sflag, size = 0x8, scoped, tag = 'scoped memory for tpu_custom_call.1']
    #allocation4 [shape = 's32[2]{0}', space=sflag, size = 0x8, scoped, tag = 'scoped memory for tpu_custom_call.1']
    #allocation5 [shape = 'u8[4096]{0}', space=vmem, size = 0x1000, scoped, tag = 'output window, operand 0']
    %8 = vsyncpa [#allocation3], 0
    %s9 = scalar_lea.sflag [#allocation3], 1
    %10 = vsyncpa %s9, 0
    %11 = vsyncpa [#allocation4], 0
    %s12 = scalar_lea.sflag [#allocation4], 1
    %13 = vsyncpa %s12, 0
    loop: start=0, step=1, limit=6
    $region2: #{tpu_custom_call.1} parent=1 // loop_pre_header
      _
    $region3: #{tpu_custom_call.1} parent=1 // loop_header
      %s15 = sphi 0, %s19
      %p16 = scmp.ge.s32.totalorder %s15, 6
      %s22 = sphi 0, %s34
      %s23 = sphi 0, %s30
      %s24 = sphi 0, %s22
      %s25 = sphi 0, %s23
      %s26 = sphi 0, %s24
      %s27 = sphi 0, %s25
      %s35 = sphi 0, %s35
      %s37 = sphi 0, %s35
      %s38 = sphi 0, %s37
      %s52 = sphi 0, %s38
      %s56 = sphi 0, %s56
      %s58 = sphi 0, %s56
      %s59 = sphi 0, %s58
      %s73 = sphi 0, %s59
      %s81 = sphi 0, %s83
      %s84 = sphi 0, %s81
      %s85 = sphi 0, %s84
      %s101 = sphi 0, %s85
      %s109 = sphi 0, %s111
      %s112 = sphi 0, %s109
      %s113 = sphi 0, %s112
      %s129 = sphi 0, %s113
    $region4: #{tpu_custom_call.1} parent=1 // loop_header_branch
      %18 = sbr.rel (%p16) target = $region8
    $region5: #{tpu_custom_call.1} parent=1 // loop_body
      %s20 = ssub.s32 %s15, 1
      %s21 = ssub.s32 %s15, 2
      %s28 = sadd.s32 1, %s23
      %p29 = scmp.ge.s32.totalorder %s28, 2
      %s30 = scalar_select %p29, 0, %s28
      %s31 = sadd.s32 1, %s22
      %s32 = scalar_select %p29, %s31, %s22
      %p33 = scmp.ge.s32.totalorder %s32, 2
      %s34 = scalar_select %p33, 0, %s32
      %s36 = sadd.s32 %s35, 1
      %p39 = scmp.eq.s32.totalorder %s15, 3
      %p40 = scmp.ne.s32.totalorder %s35, %s37
      %p41 = scmp.eq.s32.totalorder %s15, 0
      %p42 = por %p40, %p41
      %p43 = scmp.ne.s32.totalorder %s35, %s37
      %p44 = scmp.eq.s32.totalorder %s20, 3
      %p45 = por %p43, %p44
      %p46 = scmp.ne.s32.totalorder %s37, %s38
      %p47 = scmp.eq.s32.totalorder %s20, 0
      %p48 = por %p46, %p47
      %p49 = scmp.ne.s32.totalorder %s37, %s38
      %p50 = scmp.eq.s32.totalorder %s21, 3
      %p51 = por %p49, %p50
      %p53 = scmp.ne.s32.totalorder %s38, %s52
      %p54 = scmp.eq.s32.totalorder %s21, 0
      %p55 = por %p53, %p54
      %s57 = sadd.s32 %s56, 1
      %p60 = scmp.eq.s32.totalorder %s15, 3
      %p61 = scmp.ne.s32.totalorder %s56, %s58
      %p62 = scmp.eq.s32.totalorder %s15, 0
      %p63 = por %p61, %p62
      %p64 = scmp.ne.s32.totalorder %s56, %s58
      %p65 = scmp.eq.s32.totalorder %s20, 3
      %p66 = por %p64, %p65
      %p67 = scmp.ne.s32.totalorder %s58, %s59
      %p68 = scmp.eq.s32.totalorder %s20, 0
      %p69 = por %p67, %p68
      %p70 = scmp.ne.s32.totalorder %s58, %s59
      %p71 = scmp.eq.s32.totalorder %s21, 3
      %p72 = por %p70, %p71
      %p74 = scmp.ne.s32.totalorder %s59, %s73
      %p75 = scmp.eq.s32.totalorder %s21, 0
      %p76 = por %p74, %p75
      %s77 = ssub.s32 %s22, %s34
      %s78 = ssub.s32 %s23, %s30
      %s79 = sor.u32 %s77, %s78
      %p80 = scmp.eq.s32.totalorder %s79, 0
      %s82 = sadd.s32 %s81, 1
      %s83 = scalar_select %p80, %s81, %s82
      %p86 = pneg %p80
      %p87 = scmp.eq.s32.totalorder %s15, 3
      %p88 = por %p86, %p87
      %p89 = scmp.ne.s32.totalorder %s81, %s84
      %p90 = scmp.eq.s32.totalorder %s15, 0
      %p91 = por %p89, %p90
      %p92 = scmp.ne.s32.totalorder %s81, %s84
      %p93 = scmp.eq.s32.totalorder %s20, 3
      %p94 = por %p92, %p93
      %p95 = scmp.ne.s32.totalorder %s84, %s85
      %p96 = scmp.eq.s32.totalorder %s20, 0
      %p97 = por %p95, %p96
      %p98 = scmp.ne.s32.totalorder %s84, %s85
      %p99 = scmp.eq.s32.totalorder %s21, 3
      %p100 = por %p98, %p99
      %p102 = scmp.ne.s32.totalorder %s85, %s101
      %p103 = scmp.eq.s32.totalorder %s21, 0
      %p104 = por %p102, %p103
      %s105 = ssub.s32 %s22, %s34
      %s106 = ssub.s32 %s23, %s30
      %s107 = sor.u32 %s105, %s106
      %p108 = scmp.eq.s32.totalorder %s107, 0
      %s110 = sadd.s32 %s109, 1
      %s111 = scalar_select %p108, %s109, %s110
      %p114 = pneg %p108
      %p115 = scmp.eq.s32.totalorder %s15, 3
      %p116 = por %p114, %p115
      %p117 = scmp.ne.s32.totalorder %s109, %s112
      %p118 = scmp.eq.s32.totalorder %s15, 0
      %p119 = por %p117, %p118
      %p120 = scmp.ne.s32.totalorder %s109, %s112
      %p121 = scmp.eq.s32.totalorder %s20, 3
      %p122 = por %p120, %p121
      %p123 = scmp.ne.s32.totalorder %s112, %s113
      %p124 = scmp.eq.s32.totalorder %s20, 0
      %p125 = por %p123, %p124
      %p126 = scmp.ne.s32.totalorder %s112, %s113
      %p127 = scmp.eq.s32.totalorder %s21, 3
      %p128 = por %p126, %p127
      %p130 = scmp.ne.s32.totalorder %s113, %s129
      %p131 = scmp.eq.s32.totalorder %s21, 0
      %p132 = por %p130, %p131
      %p133 = scmp.le.s32.totalorder 1, %s15
      %p134 = scmp.lt.s32.totalorder %s15, 5
      %p135 = pnand %p133, %p134
      %p136 = pneg %p135
      // Predicated region
      $region9: #{tpu_custom_call.1} parent=5 // pred_check
        _
      $region10: #{tpu_custom_call.1} parent=5 // pred_check_branch
        %138 = sbr.rel (%p135) target = $region12
      $region11: #{tpu_custom_call.1} parent=5 // pred_region
        %s139 = ssub.s32 %s15, 1
        // Predicated region
        $region13: #{tpu_custom_call.1} parent=11 // pred_check
          %p140 = pneg %p48
        $region14: #{tpu_custom_call.1} parent=11 // pred_check_branch
          %142 = sbr.rel (%p140) target = $region16
        $region15: #{tpu_custom_call.1} parent=11 // pred_region
          _
        $region16: #{tpu_custom_call.1} parent=11 // pred_fallthru
          _
        // Predicated region
        $region17: #{tpu_custom_call.1} parent=11 // pred_check
          %p143 = pneg %p69
        $region18: #{tpu_custom_call.1} parent=11 // pred_check_branch
          %145 = sbr.rel (%p143) target = $region20
        $region19: #{tpu_custom_call.1} parent=11 // pred_region
          _
        $region20: #{tpu_custom_call.1} parent=11 // pred_fallthru
          _
      $region12: #{tpu_custom_call.1} parent=5 // pred_fallthru
        _
      %p146 = scmp.lt.s32.totalorder %s15, 4
      // Predicated region
      $region21: #{tpu_custom_call.1} parent=5 // pred_check
        %p147 = pneg %p146
      $region22: #{tpu_custom_call.1} parent=5 // pred_check_branch
        %149 = sbr.rel (%p147) target = $region24
      $region23: #{tpu_custom_call.1} parent=5 // pred_region
        // Predicated region
        $region25: #{tpu_custom_call.1} parent=23 // pred_check
          %p150 = pneg %p91
        $region26: #{tpu_custom_call.1} parent=23 // pred_check_branch
          %152 = sbr.rel (%p150) target = $region28
        $region27: #{tpu_custom_call.1} parent=23 // pred_region
          %s153 = sand.u32 %s81, 1
          %s154 = scalar_lea.sflag [#allocation3], %s153
          %s155 = sand.u32 %s81, 1
          %s156 = smul.addr %s155, 4
          %s157 = scalar_lea.vmem [#allocation2], %s156
          %s159 = ssub.s32 64, 64
          %160 = vsyncadd %s154, %s159
          %s161 = smul.addr %s22, 2
          %s162 = sadd.s32 %s23, %s161
          %s163 = smul.addr %s162, 64
          %s164 = scalar_lea.hbm %s2, %s163
          %s166 = sshll.u32 %s157, 4
          %s167 = int_to_ptr.vmem [resolvable:$true] %s166
          %169 = dma.hbm_to_vmem [thread:$0]  %s164, 64, %s167, %s154
        $region28: #{tpu_custom_call.1} parent=23 // pred_fallthru
          _
      $region24: #{tpu_custom_call.1} parent=5 // pred_fallthru
        _
      %p170 = scmp.le.s32.totalorder 1, %s15
      %p171 = scmp.lt.s32.totalorder %s15, 5
      %p172 = pnand %p170, %p171
      %p173 = pneg %p172
      // Predicated region
      $region29: #{tpu_custom_call.1} parent=5 // pred_check
        _
      $region30: #{tpu_custom_call.1} parent=5 // pred_check_branch
        %175 = sbr.rel (%p172) target = $region32
      $region31: #{tpu_custom_call.1} parent=5 // pred_region
        %s176 = ssub.s32 %s15, 1
        %s177 = sand.u32 %s84, 1
        %s178 = scalar_lea.sflag [#allocation3], %s177
        %s179 = sand.u32 %s84, 1
        %s180 = smul.addr %s179, 4
        %s181 = scalar_lea.vmem [#allocation2], %s180
        // Predicated region
        $region33: #{tpu_custom_call.1} parent=31 // pred_check
          %p182 = pneg %p97
        $region34: #{tpu_custom_call.1} parent=31 // pred_check_branch
          %184 = sbr.rel (%p182) target = $region36
        $region35: #{tpu_custom_call.1} parent=31 // pred_region
          %185 = dma.done %s178, 64
        $region36: #{tpu_custom_call.1} parent=31 // pred_fallthru
          _
        %p186 = pneg %p48
        %p187 = pneg %p45
        %p188 = pneg %p69
        %p189 = pneg %p66
        %s190 = sand.u32 %s84, 1
        %s191 = scalar_lea.sflag [#allocation3], %s190
        %s192 = sand.u32 %s84, 1
        %s193 = smul.addr %s192, 4
        %s194 = scalar_lea.vmem [#allocation2], %s193
        %p195 = pneg %p97
        %p196 = pneg %p94
        %p197 = pneg %p125
        %p198 = pneg %p122
        %s199 = sand.u32 %s112, 1
        %s200 = scalar_lea.sflag [#allocation4], %s199
        %s201 = sand.u32 %s112, 1
        %s202 = smul.addr %s201, 4
        %s203 = scalar_lea.vmem [#allocation5], %s202
        %v204 = vld [vmem:[%s181] sm:$0xf]
        %v205 = vld [vmem:[%s0] sm:$0xf]
        %v206 = vld [vmem:[%s1] sm:$0xf]
        %208 = vset.pattern.permute.xlu0 0
        %209 = vperm.xlu0 %208, %v206
        %v210 = vpop.permute.xlu0 %209
        %vm212 = vcmask 31744
        %v214 = vsel %vm212, %v205, 0
        %vm216 = vcmask 1043456
        %v218 = vsel %vm216, %v204, 0
        %220 = vmatprep.subr.mxu0 0.0
        %221 = vmatpush1.msra.mxu0 0.0
        %222 = vmatprep.subr.mxu0 0.0
        %223 = vmatpush1.msra.mxu0 0.0
        %224 = vmatprep.subr.mxu0 0.0
        %225 = vmatpush1.msra.mxu0 0.0
        %226 = vmatprep.subr.mxu0 0.0
        %227 = vmatpush1.msra.mxu0 0.0
        %228 = vmatprep.subr.mxu0 0.0
        %229 = vmatpush1.msra.mxu0 0.0
        %230 = vmatprep.subr.mxu0 0.0
        %231 = vmatpush1.msra.mxu0 0.0
        %232 = vmatprep.subr.mxu0 0.0
        %233 = vmatpush1.msra.mxu0 0.0
        %234 = vmatprep.subr.mxu0 0.0
        %235 = vmatpush1.msra.mxu0 0.0
        %236 = vmatprep.subr.mxu0 0.0
        %237 = vmatpush1.msra.mxu0 0.0
        %238 = vmatprep.subr.mxu0 0.0
        %239 = vmatpush1.msra.mxu0 0.0
        %240 = vmatprep.subr.mxu0 0.0
        %241 = vmatpush1.msra.mxu0 0.0
        %242 = vmatprep.subr.mxu0 0.0
        %243 = vmatpush1.msra.mxu0 0.0
        %244 = vmatprep.subr.mxu0 0.0
        %245 = vmatpush1.msra.mxu0 0.0
        %246 = vmatprep.subr.mxu0 0.0
        %247 = vmatpush1.msra.mxu0 0.0
        %248 = vmatprep.subr.mxu0 0.0
        %249 = vmatpush1.msra.mxu0 0.0
        %250 = vmatprep.subr.mxu0 0.0
        %251 = vmatpush1.msra.mxu0 %v218
        %252 = vmatprep.subr.mxu0 0.0
        %253 = vmatpush2.msra.mxu0 0.0
        %254 = vmatprep.subr.mxu0 0.0
        %255 = vmatpush2.msra.mxu0 0.0
        %256 = vmatprep.subr.mxu0 0.0
        %257 = vmatpush2.msra.mxu0 0.0
        %258 = vmatprep.subr.mxu0 0.0
        %259 = vmatpush2.msra.mxu0 0.0
        %260 = vmatprep.subr.mxu0 0.0
        %261 = vmatpush2.msra.mxu0 0.0
        %262 = vmatprep.subr.mxu0 0.0
        %263 = vmatpush2.msra.mxu0 0.0
        %264 = vmatprep.subr.mxu0 0.0
        %265 = vmatpush2.msra.mxu0 0.0
        %266 = vmatprep.subr.mxu0 0.0
        %267 = vmatpush2.msra.mxu0 0.0
        %268 = vmatprep.subr.mxu0 0.0
        %269 = vmatpush2.msra.mxu0 0.0
        %270 = vmatprep.subr.mxu0 0.0
        %271 = vmatpush2.msra.mxu0 0.0
        %272 = vmatprep.subr.mxu0 0.0
        %273 = vmatpush2.msra.mxu0 0.0
        %274 = vmatprep.subr.mxu0 0.0
        %275 = vmatpush2.msra.mxu0 0.0
        %276 = vmatprep.subr.mxu0 0.0
        %277 = vmatpush2.msra.mxu0 0.0
        %278 = vmatprep.subr.mxu0 0.0
        %279 = vmatpush2.msra.mxu0 0.0
        %280 = vmatprep.subr.mxu0 0.0
        %281 = vmatpush2.msra.mxu0 0.0
        %282 = vmatprep.subr.mxu0 0.0
        %283 = vmatpush2.msra.mxu0 0.0
        %284 = vmatprep.mubr.f32.mxu0 0.0
        %285 = vmatmul.mubr.f32.gmra.mxu0 %v214
        %v286 = vpop.f32.mrf.mxu0
        %v287 = vadd.f32 %v210, %v286
        %v288 = vpop.f32.mrf.mxu0
        %289 = vdwg.mxu0
        %v290 = vadd.f32 %v287, %v204
        %291 = vst [vmem:[%s203] sm:$0xf] %v290
        %s292 = sand.u32 %s112, 1
        %s293 = scalar_lea.sflag [#allocation4], %s292
        %s294 = sand.u32 %s112, 1
        %s295 = smul.addr %s294, 4
        %s296 = scalar_lea.vmem [#allocation5], %s295
        // Predicated region
        $region37: #{tpu_custom_call.1} parent=31 // pred_check
          %p297 = pneg %p122
        $region38: #{tpu_custom_call.1} parent=31 // pred_check_branch
          %299 = sbr.rel (%p297) target = $region40
        $region39: #{tpu_custom_call.1} parent=31 // pred_region
          %s301 = ssub.s32 64, 64
          %302 = vsyncadd %s293, %s301
          %s303 = smul.addr %s24, 2
          %s304 = sadd.s32 %s25, %s303
          %s305 = smul.addr %s304, 64
          %s306 = scalar_lea.hbm %s3, %s305
          %s308 = sshll.u32 %s296, 4
          %s309 = int_to_ptr.vmem [resolvable:$true] %s308
          %311 = dma.vmem_to_hbm [thread:$0]  %s309, 64, %s306, %s293
        $region40: #{tpu_custom_call.1} parent=31 // pred_fallthru
          _
      $region32: #{tpu_custom_call.1} parent=5 // pred_fallthru
        _
      %p312 = scmp.le.s32.totalorder 2, %s15
      // Predicated region
      $region41: #{tpu_custom_call.1} parent=5 // pred_check
        %p313 = pneg %p312
      $region42: #{tpu_custom_call.1} parent=5 // pred_check_branch
        %315 = sbr.rel (%p313) target = $region44
      $region43: #{tpu_custom_call.1} parent=5 // pred_region
        %s316 = ssub.s32 %s15, 2
        // Predicated region
        $region45: #{tpu_custom_call.1} parent=43 // pred_check
          %p317 = pneg %p128
        $region46: #{tpu_custom_call.1} parent=43 // pred_check_branch
          %319 = sbr.rel (%p317) target = $region48
        $region47: #{tpu_custom_call.1} parent=43 // pred_region
          %s320 = sand.u32 %s113, 1
          %s321 = scalar_lea.sflag [#allocation4], %s320
          %s322 = sand.u32 %s113, 1
          %s323 = smul.addr %s322, 4
          %s324 = scalar_lea.vmem [#allocation5], %s323
          %325 = dma.done %s321, 64
        $region48: #{tpu_custom_call.1} parent=43 // pred_fallthru
          _
      $region44: #{tpu_custom_call.1} parent=5 // pred_fallthru
        _
    $region6: #{tpu_custom_call.1} parent=1 // loop_footer
      %s19 = sadd.s32 1, %s15
    $region7: #{tpu_custom_call.1} parent=1 // loop_footer_branch
      %14 = sbr.rel target = $region3
    $region8: #{tpu_custom_call.1} parent=1 // loop_exit
      _
    %326 = vsyncpa [#allocation3], 1
    %s327 = scalar_lea.sflag [#allocation3], 1
    %328 = vsyncpa %s327, 1
    %329 = vsyncpa [#allocation4], 1
    %s330 = scalar_lea.sflag [#allocation4], 1
    %331 = vsyncpa %s330, 1

</llo_original>
